<compile_context>
chip_gen: v5e
topology: v5e:2x2
jax: 0.10.0
libtpu: 0.0.40
codegen_flags: <defaults>
</compile_context>

<pallas_src>
import functools

import jax
import jax.numpy as jnp
from jax.experimental import pallas as pl
from jax.experimental.pallas import tpu as pltpu


def _gather_rows_kernel(labels_ref, table_ref, out_ref, sem, *, rows_per_block):
    """Gather embedding rows straight HBM(table) -> HBM(output).

    labels_ref: SMEM (B,) int32   -- scalar prefetch (row ids)
    table_ref:  HBM  (V, H)       -- memory_space=pl.ANY (never bulk-copied)
    out_ref:    HBM  (B, H)       -- memory_space=pl.ANY (written via DMA only)
    sem:        single shared DMA semaphore
    """
    base = pl.program_id(0) * rows_per_block

    # Issue every row DMA first so they all overlap in the DMA engine, then
    # drain the shared semaphore with back-to-back waits (every copy moves the
    # same H-sized row, so the waits pair up regardless of completion order).
    copies = []
    for j in range(rows_per_block):                       # static unroll
        row = labels_ref[base + j]
        cp = pltpu.make_async_copy(table_ref.at[row],     # (H,) HBM row
                                   out_ref.at[base + j],  # (H,) HBM row
                                   sem)
        cp.start()
        copies.append(cp)
    for cp in copies:
        cp.wait()


def _default_num_blocks():
    # v7x has 2 TensorCores per chip: split the DMA-descriptor issue chain
    # across both cores.  v5e/v6e have a single TC, where one grid step is
    # strictly best (no per-step pipeline overhead).
    try:
        kind = jax.devices()[0].device_kind.lower()
    except Exception:
        return 1
    return 2 if ("v7" in kind or "7x" in kind) else 1


def label_embedding_lookup(labels, table, *, num_blocks=None):
    """out[b, :] = table[labels[b], :] via a Pallas HBM->HBM DMA-gather kernel."""
    (B,) = labels.shape
    V, H = table.shape
    if labels.dtype != jnp.int32:
        labels = labels.astype(jnp.int32)

    if num_blocks is None:
        num_blocks = _default_num_blocks()
    if num_blocks < 1 or B % num_blocks != 0:
        num_blocks = 1                     # uneven split -> single step
    rows_per_block = B // num_blocks

    itemsize = jnp.dtype(table.dtype).itemsize
    cost = pl.CostEstimate(
        flops=0,
        transcendentals=0,
        bytes_accessed=2 * B * H * itemsize + B * 4,   # read rows + write out + labels
    )

    out = pl.pallas_call(
        functools.partial(_gather_rows_kernel, rows_per_block=rows_per_block),
        out_shape=jax.ShapeDtypeStruct((B, H), table.dtype),
        grid_spec=pltpu.PrefetchScalarGridSpec(
            num_scalar_prefetch=1,
            grid=(num_blocks,),
            in_specs=[pl.BlockSpec(memory_space=pl.ANY)],   # table stays in HBM
            out_specs=pl.BlockSpec(memory_space=pl.ANY),    # gather straight into HBM out
            scratch_shapes=[pltpu.SemaphoreType.DMA(())],   # one shared DMA semaphore
        ),
        compiler_params=pltpu.CompilerParams(
            dimension_semantics=("parallel",)),
        cost_estimate=cost,
    )(labels, table)
    return out


def label_embedder_forward(labels, table, *, num_classes, dropout_prob,
                           train, force_drop_ids=None, rng_key=None):
    """Mirrors LabelEmbedder.forward: optional token_drop, then the lookup."""
    V, _ = table.shape
    use_cfg = int(dropout_prob > 0)
    assert V == num_classes + use_cfg, (
        f"embedding table has {V} rows, expected num_classes + use_cfg = "
        f"{num_classes + use_cfg}")

    use_dropout = dropout_prob > 0
    if (train and use_dropout) or (force_drop_ids is not None):
        # token_drop writes `num_classes` as a label -> the CFG row must exist.
        assert V == num_classes + 1, (
            "token_drop requires the classifier-free-guidance row "
            "(table must have num_classes + 1 rows)")
        if force_drop_ids is None:
            if rng_key is None:
                raise ValueError(
                    "rng_key is required when train=True and dropout_prob > 0 "
                    "without force_drop_ids")
            # torch.rand(B) < dropout_prob, using the JAX PRNG instead of torch RNG.
            drop_ids = jax.random.uniform(rng_key, (labels.shape[0],)) < dropout_prob
        else:
            drop_ids = force_drop_ids == 1
        labels = jnp.where(drop_ids, num_classes, labels)
    return label_embedding_lookup(labels, table)


if __name__ == "__main__":
    # Small shapes consistent with the module.
    num_classes = 100
    hidden_size = 128
    dropout_prob = 0.1          # > 0 -> a classifier-free-guidance row exists
    B = 8

    key = jax.random.PRNGKey(0)
    k_table, k_labels, k_drop = jax.random.split(key, 3)

    V = num_classes + 1         # +1 cfg embedding row because dropout_prob > 0
    table = jax.random.normal(k_table, (V, hidden_size), dtype=jnp.float32)
    labels = jax.random.randint(k_labels, (B,), 0, num_classes, dtype=jnp.int32)
    # Deterministic classifier-free-guidance drop pattern (force_drop_ids path).
    force_drop_ids = jnp.array([1, 0, 0, 1, 0, 0, 0, 1], dtype=jnp.int32)

    # Train path with forced drops.
    out = label_embedder_forward(labels, table,
                                 num_classes=num_classes,
                                 dropout_prob=dropout_prob,
                                 train=True,
                                 force_drop_ids=force_drop_ids)
    out = jax.block_until_ready(out)
    dropped = jnp.where(force_drop_ids == 1, num_classes, labels)
    assert out.shape == (B, hidden_size)
    assert jnp.array_equal(out, table[dropped]), "mismatch vs reference (token_drop path)"

    # Eval path (no drop): plain embedding lookup.
    out_eval = label_embedder_forward(labels, table,
                                      num_classes=num_classes,
                                      dropout_prob=dropout_prob,
                                      train=False)
    out_eval = jax.block_until_ready(out_eval)
    assert jnp.array_equal(out_eval, table[labels]), "mismatch vs reference (eval path)"

    # Train path with random dropout (rng_key path) vs an identically-seeded reference.
    out_rng = label_embedder_forward(labels, table,
                                     num_classes=num_classes,
                                     dropout_prob=dropout_prob,
                                     train=True,
                                     rng_key=k_drop)
    out_rng = jax.block_until_ready(out_rng)
    drop_ids_ref = jax.random.uniform(k_drop, (B,)) < dropout_prob
    labels_ref = jnp.where(drop_ids_ref, num_classes, labels)
    assert jnp.array_equal(out_rng, table[labels_ref]), "mismatch vs reference (rng path)"

    print("KERNEL_OK")
</pallas_src>

<mosaic_0001>
module attributes {stable_mosaic.version = 11 : i64} {
  func.func @_gather_rows_kernel(%arg0: i32, %arg1: memref<8xi32, #tpu.memory_space<smem>>, %arg2: memref<101x128xf32, #tpu.memory_space<any>>, %arg3: memref<8x128xf32, #tpu.memory_space<any>>, %arg4: memref<!tpu.dma_semaphore, #tpu.memory_space<semaphore_mem>>) attributes {dimension_semantics = [#tpu.dimension_semantics<parallel>], iteration_bounds = array<i64: 1>, scalar_prefetch = 1 : i64, scratch_operands = 1 : i64, tpu.core_type = #tpu.core_type<tc>, window_params = [{}, {}]} {
    %c8_i32 = arith.constant 8 : i32
    %0 = arith.muli %arg0, %c8_i32 : i32
    %c0_i32 = arith.constant 0 : i32
    %1 = arith.addi %0, %c0_i32 : i32
    %2 = arith.index_cast %1 : i32 to index
    %3 = memref.load %arg1[%2] : memref<8xi32, #tpu.memory_space<smem>>
    %c0_i32_0 = arith.constant 0 : i32
    %4 = arith.addi %0, %c0_i32_0 : i32
    %c0_i32_1 = arith.constant 0 : i32
    %5 = tpu.memref_slice %arg2[%3, %c0_i32_1] : memref<101x128xf32, #tpu.memory_space<any>> -> memref<1x128xf32, #tpu.memory_space<any>>
    %6 = tpu.memref_squeeze %5 : memref<1x128xf32, #tpu.memory_space<any>> -> memref<128xf32, #tpu.memory_space<any>>
    %c0_i32_2 = arith.constant 0 : i32
    %7 = tpu.memref_slice %arg3[%4, %c0_i32_2] : memref<8x128xf32, #tpu.memory_space<any>> -> memref<1x128xf32, #tpu.memory_space<any>>
    %8 = tpu.memref_squeeze %7 : memref<1x128xf32, #tpu.memory_space<any>> -> memref<128xf32, #tpu.memory_space<any>>
    tpu.enqueue_dma source(%6 : memref<128xf32, #tpu.memory_space<any>>) target(%8 : memref<128xf32, #tpu.memory_space<any>>) target_semaphore(%arg4 : memref<!tpu.dma_semaphore, #tpu.memory_space<semaphore_mem>>)
    %c1_i32 = arith.constant 1 : i32
    %9 = arith.addi %0, %c1_i32 : i32
    %10 = arith.index_cast %9 : i32 to index
    %11 = memref.load %arg1[%10] : memref<8xi32, #tpu.memory_space<smem>>
    %c1_i32_3 = arith.constant 1 : i32
    %12 = arith.addi %0, %c1_i32_3 : i32
    %c0_i32_4 = arith.constant 0 : i32
    %13 = tpu.memref_slice %arg2[%11, %c0_i32_4] : memref<101x128xf32, #tpu.memory_space<any>> -> memref<1x128xf32, #tpu.memory_space<any>>
    %14 = tpu.memref_squeeze %13 : memref<1x128xf32, #tpu.memory_space<any>> -> memref<128xf32, #tpu.memory_space<any>>
    %c0_i32_5 = arith.constant 0 : i32
    %15 = tpu.memref_slice %arg3[%12, %c0_i32_5] : memref<8x128xf32, #tpu.memory_space<any>> -> memref<1x128xf32, #tpu.memory_space<any>>
    %16 = tpu.memref_squeeze %15 : memref<1x128xf32, #tpu.memory_space<any>> -> memref<128xf32, #tpu.memory_space<any>>
    tpu.enqueue_dma source(%14 : memref<128xf32, #tpu.memory_space<any>>) target(%16 : memref<128xf32, #tpu.memory_space<any>>) target_semaphore(%arg4 : memref<!tpu.dma_semaphore, #tpu.memory_space<semaphore_mem>>)
    %c2_i32 = arith.constant 2 : i32
    %17 = arith.addi %0, %c2_i32 : i32
    %18 = arith.index_cast %17 : i32 to index
    %19 = memref.load %arg1[%18] : memref<8xi32, #tpu.memory_space<smem>>
    %c2_i32_6 = arith.constant 2 : i32
    %20 = arith.addi %0, %c2_i32_6 : i32
    %c0_i32_7 = arith.constant 0 : i32
    %21 = tpu.memref_slice %arg2[%19, %c0_i32_7] : memref<101x128xf32, #tpu.memory_space<any>> -> memref<1x128xf32, #tpu.memory_space<any>>
    %22 = tpu.memref_squeeze %21 : memref<1x128xf32, #tpu.memory_space<any>> -> memref<128xf32, #tpu.memory_space<any>>
    %c0_i32_8 = arith.constant 0 : i32
    %23 = tpu.memref_slice %arg3[%20, %c0_i32_8] : memref<8x128xf32, #tpu.memory_space<any>> -> memref<1x128xf32, #tpu.memory_space<any>>
    %24 = tpu.memref_squeeze %23 : memref<1x128xf32, #tpu.memory_space<any>> -> memref<128xf32, #tpu.memory_space<any>>
    tpu.enqueue_dma source(%22 : memref<128xf32, #tpu.memory_space<any>>) target(%24 : memref<128xf32, #tpu.memory_space<any>>) target_semaphore(%arg4 : memref<!tpu.dma_semaphore, #tpu.memory_space<semaphore_mem>>)
    %c3_i32 = arith.constant 3 : i32
    %25 = arith.addi %0, %c3_i32 : i32
    %26 = arith.index_cast %25 : i32 to index
    %27 = memref.load %arg1[%26] : memref<8xi32, #tpu.memory_space<smem>>
    %c3_i32_9 = arith.constant 3 : i32
    %28 = arith.addi %0, %c3_i32_9 : i32
    %c0_i32_10 = arith.constant 0 : i32
    %29 = tpu.memref_slice %arg2[%27, %c0_i32_10] : memref<101x128xf32, #tpu.memory_space<any>> -> memref<1x128xf32, #tpu.memory_space<any>>
    %30 = tpu.memref_squeeze %29 : memref<1x128xf32, #tpu.memory_space<any>> -> memref<128xf32, #tpu.memory_space<any>>
    %c0_i32_11 = arith.constant 0 : i32
    %31 = tpu.memref_slice %arg3[%28, %c0_i32_11] : memref<8x128xf32, #tpu.memory_space<any>> -> memref<1x128xf32, #tpu.memory_space<any>>
    %32 = tpu.memref_squeeze %31 : memref<1x128xf32, #tpu.memory_space<any>> -> memref<128xf32, #tpu.memory_space<any>>
    tpu.enqueue_dma source(%30 : memref<128xf32, #tpu.memory_space<any>>) target(%32 : memref<128xf32, #tpu.memory_space<any>>) target_semaphore(%arg4 : memref<!tpu.dma_semaphore, #tpu.memory_space<semaphore_mem>>)
    %c4_i32 = arith.constant 4 : i32
    %33 = arith.addi %0, %c4_i32 : i32
    %34 = arith.index_cast %33 : i32 to index
    %35 = memref.load %arg1[%34] : memref<8xi32, #tpu.memory_space<smem>>
    %c4_i32_12 = arith.constant 4 : i32
    %36 = arith.addi %0, %c4_i32_12 : i32
    %c0_i32_13 = arith.constant 0 : i32
    %37 = tpu.memref_slice %arg2[%35, %c0_i32_13] : memref<101x128xf32, #tpu.memory_space<any>> -> memref<1x128xf32, #tpu.memory_space<any>>
    %38 = tpu.memref_squeeze %37 : memref<1x128xf32, #tpu.memory_space<any>> -> memref<128xf32, #tpu.memory_space<any>>
    %c0_i32_14 = arith.constant 0 : i32
    %39 = tpu.memref_slice %arg3[%36, %c0_i32_14] : memref<8x128xf32, #tpu.memory_space<any>> -> memref<1x128xf32, #tpu.memory_space<any>>
    %40 = tpu.memref_squeeze %39 : memref<1x128xf32, #tpu.memory_space<any>> -> memref<128xf32, #tpu.memory_space<any>>
    tpu.enqueue_dma source(%38 : memref<128xf32, #tpu.memory_space<any>>) target(%40 : memref<128xf32, #tpu.memory_space<any>>) target_semaphore(%arg4 : memref<!tpu.dma_semaphore, #tpu.memory_space<semaphore_mem>>)
    %c5_i32 = arith.constant 5 : i32
    %41 = arith.addi %0, %c5_i32 : i32
    %42 = arith.index_cast %41 : i32 to index
    %43 = memref.load %arg1[%42] : memref<8xi32, #tpu.memory_space<smem>>
    %c5_i32_15 = arith.constant 5 : i32
    %44 = arith.addi %0, %c5_i32_15 : i32
    %c0_i32_16 = arith.constant 0 : i32
    %45 = tpu.memref_slice %arg2[%43, %c0_i32_16] : memref<101x128xf32, #tpu.memory_space<any>> -> memref<1x128xf32, #tpu.memory_space<any>>
    %46 = tpu.memref_squeeze %45 : memref<1x128xf32, #tpu.memory_space<any>> -> memref<128xf32, #tpu.memory_space<any>>
    %c0_i32_17 = arith.constant 0 : i32
    %47 = tpu.memref_slice %arg3[%44, %c0_i32_17] : memref<8x128xf32, #tpu.memory_space<any>> -> memref<1x128xf32, #tpu.memory_space<any>>
    %48 = tpu.memref_squeeze %47 : memref<1x128xf32, #tpu.memory_space<any>> -> memref<128xf32, #tpu.memory_space<any>>
    tpu.enqueue_dma source(%46 : memref<128xf32, #tpu.memory_space<any>>) target(%48 : memref<128xf32, #tpu.memory_space<any>>) target_semaphore(%arg4 : memref<!tpu.dma_semaphore, #tpu.memory_space<semaphore_mem>>)
    %c6_i32 = arith.constant 6 : i32
    %49 = arith.addi %0, %c6_i32 : i32
    %50 = arith.index_cast %49 : i32 to index
    %51 = memref.load %arg1[%50] : memref<8xi32, #tpu.memory_space<smem>>
    %c6_i32_18 = arith.constant 6 : i32
    %52 = arith.addi %0, %c6_i32_18 : i32
    %c0_i32_19 = arith.constant 0 : i32
    %53 = tpu.memref_slice %arg2[%51, %c0_i32_19] : memref<101x128xf32, #tpu.memory_space<any>> -> memref<1x128xf32, #tpu.memory_space<any>>
    %54 = tpu.memref_squeeze %53 : memref<1x128xf32, #tpu.memory_space<any>> -> memref<128xf32, #tpu.memory_space<any>>
    %c0_i32_20 = arith.constant 0 : i32
    %55 = tpu.memref_slice %arg3[%52, %c0_i32_20] : memref<8x128xf32, #tpu.memory_space<any>> -> memref<1x128xf32, #tpu.memory_space<any>>
    %56 = tpu.memref_squeeze %55 : memref<1x128xf32, #tpu.memory_space<any>> -> memref<128xf32, #tpu.memory_space<any>>
    tpu.enqueue_dma source(%54 : memref<128xf32, #tpu.memory_space<any>>) target(%56 : memref<128xf32, #tpu.memory_space<any>>) target_semaphore(%arg4 : memref<!tpu.dma_semaphore, #tpu.memory_space<semaphore_mem>>)
    %c7_i32 = arith.constant 7 : i32
    %57 = arith.addi %0, %c7_i32 : i32
    %58 = arith.index_cast %57 : i32 to index
    %59 = memref.load %arg1[%58] : memref<8xi32, #tpu.memory_space<smem>>
    %c7_i32_21 = arith.constant 7 : i32
    %60 = arith.addi %0, %c7_i32_21 : i32
    %c0_i32_22 = arith.constant 0 : i32
    %61 = tpu.memref_slice %arg2[%59, %c0_i32_22] : memref<101x128xf32, #tpu.memory_space<any>> -> memref<1x128xf32, #tpu.memory_space<any>>
    %62 = tpu.memref_squeeze %61 : memref<1x128xf32, #tpu.memory_space<any>> -> memref<128xf32, #tpu.memory_space<any>>
    %c0_i32_23 = arith.constant 0 : i32
    %63 = tpu.memref_slice %arg3[%60, %c0_i32_23] : memref<8x128xf32, #tpu.memory_space<any>> -> memref<1x128xf32, #tpu.memory_space<any>>
    %64 = tpu.memref_squeeze %63 : memref<1x128xf32, #tpu.memory_space<any>> -> memref<128xf32, #tpu.memory_space<any>>
    tpu.enqueue_dma source(%62 : memref<128xf32, #tpu.memory_space<any>>) target(%64 : memref<128xf32, #tpu.memory_space<any>>) target_semaphore(%arg4 : memref<!tpu.dma_semaphore, #tpu.memory_space<semaphore_mem>>)
    %c0_i32_24 = arith.constant 0 : i32
    %65 = tpu.memref_slice %arg2[%3, %c0_i32_24] : memref<101x128xf32, #tpu.memory_space<any>> -> memref<1x128xf32, #tpu.memory_space<any>>
    %66 = tpu.memref_squeeze %65 : memref<1x128xf32, #tpu.memory_space<any>> -> memref<128xf32, #tpu.memory_space<any>>
    %c0_i32_25 = arith.constant 0 : i32
    %67 = tpu.memref_slice %arg3[%4, %c0_i32_25] : memref<8x128xf32, #tpu.memory_space<any>> -> memref<1x128xf32, #tpu.memory_space<any>>
    %68 = tpu.memref_squeeze %67 : memref<1x128xf32, #tpu.memory_space<any>> -> memref<128xf32, #tpu.memory_space<any>>
    tpu.wait_dma2 semaphore(%arg4 : memref<!tpu.dma_semaphore, #tpu.memory_space<semaphore_mem>>) src(%66 : memref<128xf32, #tpu.memory_space<any>>) dst(%68 : memref<128xf32, #tpu.memory_space<any>>)
    %c0_i32_26 = arith.constant 0 : i32
    %69 = tpu.memref_slice %arg2[%11, %c0_i32_26] : memref<101x128xf32, #tpu.memory_space<any>> -> memref<1x128xf32, #tpu.memory_space<any>>
    %70 = tpu.memref_squeeze %69 : memref<1x128xf32, #tpu.memory_space<any>> -> memref<128xf32, #tpu.memory_space<any>>
    %c0_i32_27 = arith.constant 0 : i32
    %71 = tpu.memref_slice %arg3[%12, %c0_i32_27] : memref<8x128xf32, #tpu.memory_space<any>> -> memref<1x128xf32, #tpu.memory_space<any>>
    %72 = tpu.memref_squeeze %71 : memref<1x128xf32, #tpu.memory_space<any>> -> memref<128xf32, #tpu.memory_space<any>>
    tpu.wait_dma2 semaphore(%arg4 : memref<!tpu.dma_semaphore, #tpu.memory_space<semaphore_mem>>) src(%70 : memref<128xf32, #tpu.memory_space<any>>) dst(%72 : memref<128xf32, #tpu.memory_space<any>>)
    %c0_i32_28 = arith.constant 0 : i32
    %73 = tpu.memref_slice %arg2[%19, %c0_i32_28] : memref<101x128xf32, #tpu.memory_space<any>> -> memref<1x128xf32, #tpu.memory_space<any>>
    %74 = tpu.memref_squeeze %73 : memref<1x128xf32, #tpu.memory_space<any>> -> memref<128xf32, #tpu.memory_space<any>>
    %c0_i32_29 = arith.constant 0 : i32
    %75 = tpu.memref_slice %arg3[%20, %c0_i32_29] : memref<8x128xf32, #tpu.memory_space<any>> -> memref<1x128xf32, #tpu.memory_space<any>>
    %76 = tpu.memref_squeeze %75 : memref<1x128xf32, #tpu.memory_space<any>> -> memref<128xf32, #tpu.memory_space<any>>
    tpu.wait_dma2 semaphore(%arg4 : memref<!tpu.dma_semaphore, #tpu.memory_space<semaphore_mem>>) src(%74 : memref<128xf32, #tpu.memory_space<any>>) dst(%76 : memref<128xf32, #tpu.memory_space<any>>)
    %c0_i32_30 = arith.constant 0 : i32
    %77 = tpu.memref_slice %arg2[%27, %c0_i32_30] : memref<101x128xf32, #tpu.memory_space<any>> -> memref<1x128xf32, #tpu.memory_space<any>>
    %78 = tpu.memref_squeeze %77 : memref<1x128xf32, #tpu.memory_space<any>> -> memref<128xf32, #tpu.memory_space<any>>
    %c0_i32_31 = arith.constant 0 : i32
    %79 = tpu.memref_slice %arg3[%28, %c0_i32_31] : memref<8x128xf32, #tpu.memory_space<any>> -> memref<1x128xf32, #tpu.memory_space<any>>
    %80 = tpu.memref_squeeze %79 : memref<1x128xf32, #tpu.memory_space<any>> -> memref<128xf32, #tpu.memory_space<any>>
    tpu.wait_dma2 semaphore(%arg4 : memref<!tpu.dma_semaphore, #tpu.memory_space<semaphore_mem>>) src(%78 : memref<128xf32, #tpu.memory_space<any>>) dst(%80 : memref<128xf32, #tpu.memory_space<any>>)
    %c0_i32_32 = arith.constant 0 : i32
    %81 = tpu.memref_slice %arg2[%35, %c0_i32_32] : memref<101x128xf32, #tpu.memory_space<any>> -> memref<1x128xf32, #tpu.memory_space<any>>
    %82 = tpu.memref_squeeze %81 : memref<1x128xf32, #tpu.memory_space<any>> -> memref<128xf32, #tpu.memory_space<any>>
    %c0_i32_33 = arith.constant 0 : i32
    %83 = tpu.memref_slice %arg3[%36, %c0_i32_33] : memref<8x128xf32, #tpu.memory_space<any>> -> memref<1x128xf32, #tpu.memory_space<any>>
    %84 = tpu.memref_squeeze %83 : memref<1x128xf32, #tpu.memory_space<any>> -> memref<128xf32, #tpu.memory_space<any>>
    tpu.wait_dma2 semaphore(%arg4 : memref<!tpu.dma_semaphore, #tpu.memory_space<semaphore_mem>>) src(%82 : memref<128xf32, #tpu.memory_space<any>>) dst(%84 : memref<128xf32, #tpu.memory_space<any>>)
    %c0_i32_34 = arith.constant 0 : i32
    %85 = tpu.memref_slice %arg2[%43, %c0_i32_34] : memref<101x128xf32, #tpu.memory_space<any>> -> memref<1x128xf32, #tpu.memory_space<any>>
    %86 = tpu.memref_squeeze %85 : memref<1x128xf32, #tpu.memory_space<any>> -> memref<128xf32, #tpu.memory_space<any>>
    %c0_i32_35 = arith.constant 0 : i32
    %87 = tpu.memref_slice %arg3[%44, %c0_i32_35] : memref<8x128xf32, #tpu.memory_space<any>> -> memref<1x128xf32, #tpu.memory_space<any>>
    %88 = tpu.memref_squeeze %87 : memref<1x128xf32, #tpu.memory_space<any>> -> memref<128xf32, #tpu.memory_space<any>>
    tpu.wait_dma2 semaphore(%arg4 : memref<!tpu.dma_semaphore, #tpu.memory_space<semaphore_mem>>) src(%86 : memref<128xf32, #tpu.memory_space<any>>) dst(%88 : memref<128xf32, #tpu.memory_space<any>>)
    %c0_i32_36 = arith.constant 0 : i32
    %89 = tpu.memref_slice %arg2[%51, %c0_i32_36] : memref<101x128xf32, #tpu.memory_space<any>> -> memref<1x128xf32, #tpu.memory_space<any>>
    %90 = tpu.memref_squeeze %89 : memref<1x128xf32, #tpu.memory_space<any>> -> memref<128xf32, #tpu.memory_space<any>>
    %c0_i32_37 = arith.constant 0 : i32
    %91 = tpu.memref_slice %arg3[%52, %c0_i32_37] : memref<8x128xf32, #tpu.memory_space<any>> -> memref<1x128xf32, #tpu.memory_space<any>>
    %92 = tpu.memref_squeeze %91 : memref<1x128xf32, #tpu.memory_space<any>> -> memref<128xf32, #tpu.memory_space<any>>
    tpu.wait_dma2 semaphore(%arg4 : memref<!tpu.dma_semaphore, #tpu.memory_space<semaphore_mem>>) src(%90 : memref<128xf32, #tpu.memory_space<any>>) dst(%92 : memref<128xf32, #tpu.memory_space<any>>)
    %c0_i32_38 = arith.constant 0 : i32
    %93 = tpu.memref_slice %arg2[%59, %c0_i32_38] : memref<101x128xf32, #tpu.memory_space<any>> -> memref<1x128xf32, #tpu.memory_space<any>>
    %94 = tpu.memref_squeeze %93 : memref<1x128xf32, #tpu.memory_space<any>> -> memref<128xf32, #tpu.memory_space<any>>
    %c0_i32_39 = arith.constant 0 : i32
    %95 = tpu.memref_slice %arg3[%60, %c0_i32_39] : memref<8x128xf32, #tpu.memory_space<any>> -> memref<1x128xf32, #tpu.memory_space<any>>
    %96 = tpu.memref_squeeze %95 : memref<1x128xf32, #tpu.memory_space<any>> -> memref<128xf32, #tpu.memory_space<any>>
    tpu.wait_dma2 semaphore(%arg4 : memref<!tpu.dma_semaphore, #tpu.memory_space<semaphore_mem>>) src(%94 : memref<128xf32, #tpu.memory_space<any>>) dst(%96 : memref<128xf32, #tpu.memory_space<any>>)
    return
  }
}

</mosaic_0001>

<llo_original>
// kernel: tpu_custom_call.1
$region0: #{tpu_custom_call.1}
  #allocation0 [shape = 'u32[]', space=smem, size = 0x4, offset = 0x4, fixed_abs, tag = 'smem constant byte address 0x4 - core index']
  #allocation1 [shape = 'u32[72,128]{1,0:T(1,128)}', space=vmem, size = 0x9000, scoped, tag = 'internal scratch']
  #allocation2 [shape = 's32[1]{0}', space=sflag, size = 0x4, scoped, tag = 'scratch operand']
  #allocation3 [shape = 's32[1]{0}', space=sflag, size = 0x4, scoped, tag = 'scoped memory for tpu_custom_call.1']
  #allocation4 [shape = 'u8[512]{0}', space=smem, size = 0x200, scoped, tag = 'prefetched SMEM operand 0']
  #allocation5 [shape = 's32[]', space=sflag, size = 0x4, offset = 0, fixed_abs, tag = 'sflag constant byte address 0x0 - dummy sync flag']
  #allocation6 [shape = 'u32[0]{0}', space=smem, size = 0, offset = 0, fixed_abs, tag = 'smem constant byte address 0x0 - null']
  #allocation7 [shape = 's32[]', space=sflag, size = 0x4, offset = 0, fixed_abs, tag = 'sflag constant byte address 0x0 - dummy sync flag']
  #allocation8 [shape = 'u32[0]{0}', space=smem, size = 0, offset = 0, fixed_abs, tag = 'smem constant byte address 0x0 - null']
  #allocation9 [shape = 's32[]', space=sflag, size = 0x4, offset = 0, fixed_abs, tag = 'sflag constant byte address 0x0 - dummy sync flag']
  #allocation10 [shape = 'u32[0]{0}', space=smem, size = 0, offset = 0, fixed_abs, tag = 'smem constant byte address 0x0 - null']
  #allocation11 [shape = 's32[]', space=sflag, size = 0x4, offset = 0, fixed_abs, tag = 'sflag constant byte address 0x0 - dummy sync flag']
  #allocation12 [shape = 'u32[0]{0}', space=smem, size = 0, offset = 0, fixed_abs, tag = 'smem constant byte address 0x0 - null']
  #allocation13 [shape = 's32[]', space=sflag, size = 0x4, offset = 0, fixed_abs, tag = 'sflag constant byte address 0x0 - dummy sync flag']
  #allocation14 [shape = 'u32[0]{0}', space=smem, size = 0, offset = 0, fixed_abs, tag = 'smem constant byte address 0x0 - null']
  #allocation15 [shape = 's32[]', space=sflag, size = 0x4, offset = 0, fixed_abs, tag = 'sflag constant byte address 0x0 - dummy sync flag']
  #allocation16 [shape = 'u32[0]{0}', space=smem, size = 0, offset = 0, fixed_abs, tag = 'smem constant byte address 0x0 - null']
  #allocation17 [shape = 's32[]', space=sflag, size = 0x4, offset = 0, fixed_abs, tag = 'sflag constant byte address 0x0 - dummy sync flag']
  #allocation18 [shape = 'u32[0]{0}', space=smem, size = 0, offset = 0, fixed_abs, tag = 'smem constant byte address 0x0 - null']
  #allocation19 [shape = 's32[]', space=sflag, size = 0x4, offset = 0, fixed_abs, tag = 'sflag constant byte address 0x0 - dummy sync flag']
  #allocation20 [shape = 'u32[0]{0}', space=smem, size = 0, offset = 0, fixed_abs, tag = 'smem constant byte address 0x0 - null']
  %s0 = inlined_call_operand.hbm [shape: s32[8], index: 0, kind: input, shape index: {}]
  %s1 = inlined_call_operand.hbm [shape: f32[101,128], index: 1, kind: input, shape index: {}]
  %s2 = inlined_call_operand.hbm [shape: f32[8,128], index: 2, kind: output, shape index: {}]
  %s3 = sld [smem:[#allocation0]]
  $region2: #{tpu_custom_call.1} parent=0
    _
  %s5 = ssub.s32 1, %s3
  %s6 = scalar_select 0, %s5, %s3
  %s8 = sshll.u32 %s0, 4
  %s9 = int_to_ptr.hbm [resolvable:$true] %s8
  %11 = dma.hbm_to_smem %s9, 16, [#allocation4], [#allocation3]
  %13 = dma.done [#allocation3], 16
  %14 = sfence
  %s15 = smul.u32 0, 8
  %s16 = sld [smem:[#allocation4 + %s15]]
  %s17 = scalar_lea.hbm %s1, %s16
  %s18 = scalar_lea.hbm %s2, %s15
  %s20 = sshll.u32 1, 14
  %s21 = sxor.u32 4294967295, %s20
  %s23 = sshll.u32 %s17, 4
  %s24 = int_to_ptr.hbm [resolvable:$true] %s23
  %s25 = sshll.u32 %s18, 4
  %s26 = int_to_ptr.hbm [resolvable:$true] %s25
  %29 = dma.general %s24, 16, %s26, [#allocation2], [#allocation5], [#allocation6], 0, 0
  %s30 = sadd.s32 %s15, 1
  %s31 = sld [smem:[#allocation4 + %s30]]
  %s32 = scalar_lea.hbm %s1, %s31
  %s33 = scalar_lea.hbm %s2, %s30
  %s35 = sshll.u32 1, 14
  %s36 = sxor.u32 4294967295, %s35
  %s38 = sshll.u32 %s32, 4
  %s39 = int_to_ptr.hbm [resolvable:$true] %s38
  %s40 = sshll.u32 %s33, 4
  %s41 = int_to_ptr.hbm [resolvable:$true] %s40
  %44 = dma.general %s39, 16, %s41, [#allocation2], [#allocation7], [#allocation8], 0, 0
  %s45 = sadd.s32 %s15, 2
  %s46 = sld [smem:[#allocation4 + %s45]]
  %s47 = scalar_lea.hbm %s1, %s46
  %s48 = scalar_lea.hbm %s2, %s45
  %s50 = sshll.u32 1, 14
  %s51 = sxor.u32 4294967295, %s50
  %s53 = sshll.u32 %s47, 4
  %s54 = int_to_ptr.hbm [resolvable:$true] %s53
  %s55 = sshll.u32 %s48, 4
  %s56 = int_to_ptr.hbm [resolvable:$true] %s55
  %59 = dma.general %s54, 16, %s56, [#allocation2], [#allocation9], [#allocation10], 0, 0
  %s60 = sadd.s32 %s15, 3
  %s61 = sld [smem:[#allocation4 + %s60]]
  %s62 = scalar_lea.hbm %s1, %s61
  %s63 = scalar_lea.hbm %s2, %s60
  %s65 = sshll.u32 1, 14
  %s66 = sxor.u32 4294967295, %s65
  %s68 = sshll.u32 %s62, 4
  %s69 = int_to_ptr.hbm [resolvable:$true] %s68
  %s70 = sshll.u32 %s63, 4
  %s71 = int_to_ptr.hbm [resolvable:$true] %s70
  %74 = dma.general %s69, 16, %s71, [#allocation2], [#allocation11], [#allocation12], 0, 0
  %s75 = sadd.s32 %s15, 4
  %s76 = sld [smem:[#allocation4 + %s75]]
  %s77 = scalar_lea.hbm %s1, %s76
  %s78 = scalar_lea.hbm %s2, %s75
  %s80 = sshll.u32 1, 14
  %s81 = sxor.u32 4294967295, %s80
  %s83 = sshll.u32 %s77, 4
  %s84 = int_to_ptr.hbm [resolvable:$true] %s83
  %s85 = sshll.u32 %s78, 4
  %s86 = int_to_ptr.hbm [resolvable:$true] %s85
  %89 = dma.general %s84, 16, %s86, [#allocation2], [#allocation13], [#allocation14], 0, 0
  %s90 = sadd.s32 %s15, 5
  %s91 = sld [smem:[#allocation4 + %s90]]
  %s92 = scalar_lea.hbm %s1, %s91
  %s93 = scalar_lea.hbm %s2, %s90
  %s95 = sshll.u32 1, 14
  %s96 = sxor.u32 4294967295, %s95
  %s98 = sshll.u32 %s92, 4
  %s99 = int_to_ptr.hbm [resolvable:$true] %s98
  %s100 = sshll.u32 %s93, 4
  %s101 = int_to_ptr.hbm [resolvable:$true] %s100
  %104 = dma.general %s99, 16, %s101, [#allocation2], [#allocation15], [#allocation16], 0, 0
  %s105 = sadd.s32 %s15, 6
  %s106 = sld [smem:[#allocation4 + %s105]]
  %s107 = scalar_lea.hbm %s1, %s106
  %s108 = scalar_lea.hbm %s2, %s105
  %s110 = sshll.u32 1, 14
  %s111 = sxor.u32 4294967295, %s110
  %s113 = sshll.u32 %s107, 4
  %s114 = int_to_ptr.hbm [resolvable:$true] %s113
  %s115 = sshll.u32 %s108, 4
  %s116 = int_to_ptr.hbm [resolvable:$true] %s115
  %119 = dma.general %s114, 16, %s116, [#allocation2], [#allocation17], [#allocation18], 0, 0
  %s120 = sadd.s32 %s15, 7
  %s121 = sld [smem:[#allocation4 + %s120]]
  %s122 = scalar_lea.hbm %s1, %s121
  %s123 = scalar_lea.hbm %s2, %s120
  %s125 = sshll.u32 1, 14
  %s126 = sxor.u32 4294967295, %s125
  %s128 = sshll.u32 %s122, 4
  %s129 = int_to_ptr.hbm [resolvable:$true] %s128
  %s130 = sshll.u32 %s123, 4
  %s131 = int_to_ptr.hbm [resolvable:$true] %s130
  %134 = dma.general %s129, 16, %s131, [#allocation2], [#allocation19], [#allocation20], 0, 0
  %136 = dma.done [#allocation2], 16
  %138 = dma.done [#allocation2], 16
  %140 = dma.done [#allocation2], 16
  %142 = dma.done [#allocation2], 16
  %144 = dma.done [#allocation2], 16
  %146 = dma.done [#allocation2], 16
  %148 = dma.done [#allocation2], 16
  %150 = dma.done [#allocation2], 16
  %151 = vsyncmov [#allocation2]
  %s152 = vpop.sfrf %151
  %p153 = scmp.eq.s32.totalorder %s152, 0
  %p154 = pneg %p153
  %156 = shalt.err (%p154)

</llo_original>
